<compile_context>
chip_gen: v7x
topology: tpu7x:2x2x1
jax: 0.10.0
libtpu: 0.0.40
codegen_flags: <defaults>
</compile_context>

<pallas_src>
import jax
import jax.numpy as jnp
from jax.experimental import pallas as pl
from jax.experimental.pallas import tpu as pltpu


def linear_clamp_kernel(x_ref, w_ref, o_ref):
    # x_ref: (B, IN) f32, w_ref: (OUT=1, IN) f32, o_ref: (B, OUT=1) f32
    x = x_ref[...]
    w = w_ref[...]
    # y[b, 0] = sum_k x[b, k] * w[0, k]  -> VPU multiply + lane reduce (no MXU)
    y = jnp.sum(x * w, axis=-1, keepdims=True)
    # clamp_min(y, -1.0)
    o_ref[...] = jnp.maximum(y, -1.0).astype(o_ref.dtype)


def model_forward(x, weight):
    B, IN = x.shape
    OUT, IN_w = weight.shape
    assert IN == IN_w and OUT == 1
    bytes_io = 4 * (B * IN + OUT * IN + B * OUT)  # ~68 bytes at (1,8)
    return pl.pallas_call(
        linear_clamp_kernel,
        out_shape=jax.ShapeDtypeStruct((B, OUT), x.dtype),
        # No grid: single invocation, full arrays resident in VMEM.
        in_specs=[
            pl.BlockSpec(memory_space=pltpu.MemorySpace.VMEM),
            pl.BlockSpec(memory_space=pltpu.MemorySpace.VMEM),
        ],
        out_specs=pl.BlockSpec(memory_space=pltpu.MemorySpace.VMEM),
        cost_estimate=pl.CostEstimate(
            flops=2 * B * IN * OUT,
            transcendentals=0,
            bytes_accessed=bytes_io,
        ),
    )(x, weight)


if __name__ == "__main__":
    key = jax.random.PRNGKey(0)
    kx, kw = jax.random.split(key)

    # Input matching the PyTorch module: x1 = torch.randn(1, 8)
    x1 = jax.random.normal(kx, (1, 8), dtype=jnp.float32)

    # Deterministic weight init mimicking nn.Linear(8, 1, bias=False):
    # uniform(-1/sqrt(in_features), 1/sqrt(in_features))
    bound = 1.0 / jnp.sqrt(8.0)
    weight = jax.random.uniform(kw, (1, 8), dtype=jnp.float32,
                                minval=-bound, maxval=bound)

    out = model_forward(x1, weight)
    jax.block_until_ready(out)

    # Pure-JAX reference check
    ref = jnp.maximum(x1 @ weight.T, -1.0)
    assert out.shape == (1, 1)
    assert jnp.allclose(out, ref, atol=1e-6), (out, ref)

    print("KERNEL_OK")
</pallas_src>

<mosaic_0001>
module attributes {stable_mosaic.version = 11 : i64} {
  func.func @linear_clamp_kernel(%arg0: memref<1x8xf32, #tpu.memory_space<vmem>>, %arg1: memref<1x8xf32, #tpu.memory_space<vmem>>, %arg2: memref<1x1xf32, #tpu.memory_space<vmem>>) attributes {dimension_semantics = [], scalar_prefetch = 0 : i64, scratch_operands = 0 : i64, tpu.core_type = #tpu.core_type<tc>} {
    %c0 = arith.constant 0 : index
    %c0_0 = arith.constant 0 : index
    %0 = vector.load %arg0[%c0, %c0_0] : memref<1x8xf32, #tpu.memory_space<vmem>>, vector<1x8xf32>
    %c0_1 = arith.constant 0 : index
    %c0_2 = arith.constant 0 : index
    %1 = vector.load %arg1[%c0_1, %c0_2] : memref<1x8xf32, #tpu.memory_space<vmem>>, vector<1x8xf32>
    %2 = arith.mulf %0, %1 : vector<1x8xf32>
    %cst = arith.constant dense<0.000000e+00> : vector<1xf32>
    %3 = vector.multi_reduction <add>, %2, %cst [1] : vector<1x8xf32> to vector<1xf32>
    %4 = vector.shape_cast %3 : vector<1xf32> to vector<1x1xf32>
    %cst_3 = arith.constant -1.000000e+00 : f32
    %5 = vector.broadcast %cst_3 : f32 to vector<1x1xf32>
    %6 = arith.maximumf %4, %5 : vector<1x1xf32>
    %c0_4 = arith.constant 0 : index
    %c0_5 = arith.constant 0 : index
    %7 = vector.load %arg2[%c0_4, %c0_5] : memref<1x1xf32, #tpu.memory_space<vmem>>, vector<1x1xf32>
    tpu.vector_store %arg2[%c0_4, %c0_5], %6 {strides = array<i32>} : memref<1x1xf32, #tpu.memory_space<vmem>>, vector<1x1xf32>,
    return
  }
}

</mosaic_0001>

<llo_original>
// kernel: tpu_custom_call.1
$region0: #{tpu_custom_call.1}
  #allocation0 [shape = 'u32[]', space=smem, size = 0x4, offset = 0x4, fixed_abs, tag = 'smem constant byte address 0x4 - core index']
  #allocation1 [shape = 'u32[144,128]{1,0:T(1,128)}', space=vmem, size = 0x12000, scoped, tag = 'internal scratch']
  %s0 = inlined_call_operand.hbm [shape: f32[1,8], index: 0, kind: input, shape index: {}]
  %s1 = inlined_call_operand.vmem [shape: f32[1,8], index: 1, kind: input, shape index: {}]
  %s2 = inlined_call_operand.hbm [shape: f32[1,1], index: 2, kind: output, shape index: {}]
  %s3 = sld [smem:[#allocation0]]
  $region22: #{tpu_custom_call.1} parent=0
    _
  %s5 = ssub.s32 1, %s3
  %s6 = scalar_select 0, %s5, %s3
  $region1: #{tpu_custom_call.1} parent=0
    #allocation2 [shape = 'u8[512]{0}', space=vmem, size = 0x400, scoped, tag = 'input window, operand 0, single buffered']
    #allocation3 [shape = 's32[1]{0}', space=sflag, size = 0x4, scoped, tag = 'scoped memory for tpu_custom_call.1']
    #allocation4 [shape = 's32[1]{0}', space=sflag, size = 0x4, scoped, tag = 'scoped memory for tpu_custom_call.1']
    #allocation5 [shape = 'u8[512]{0}', space=vmem, size = 0x400, scoped, tag = 'output window, operand 0, single buffered']
    %7 = vsyncpa [#allocation3], 0
    %8 = vsyncpa [#allocation4], 0
    // Predicated region
    $region2: #{tpu_custom_call.1} parent=1 // pred_check
      _
    $region3: #{tpu_custom_call.1} parent=1 // pred_check_branch
      %10 = sbr.rel (0) target = $region5
    $region4: #{tpu_custom_call.1} parent=1 // pred_region
      %s12 = ssub.s32 16, 16
      %13 = vsyncadd [#allocation3], %s12
      %s15 = sshll.u32 [#allocation2], 4
      %s16 = int_to_ptr.vmem [resolvable:$true] %s15
      %18 = dma.hbm_to_vmem [thread:$0]  %s0, 16, %s16, [#allocation3]
    $region5: #{tpu_custom_call.1} parent=1 // pred_fallthru
      _
    // Predicated region
    $region6: #{tpu_custom_call.1} parent=1 // pred_check
      _
    $region7: #{tpu_custom_call.1} parent=1 // pred_check_branch
      %20 = sbr.rel (0) target = $region9
    $region8: #{tpu_custom_call.1} parent=1 // pred_region
      _
    $region9: #{tpu_custom_call.1} parent=1 // pred_fallthru
      _
    // Predicated region
    $region10: #{tpu_custom_call.1} parent=1 // pred_check
      _
    $region11: #{tpu_custom_call.1} parent=1 // pred_check_branch
      %22 = sbr.rel (0) target = $region13
    $region12: #{tpu_custom_call.1} parent=1 // pred_region
      %23 = dma.done [#allocation3], 16
    $region13: #{tpu_custom_call.1} parent=1 // pred_fallthru
      _
    %v24 = vld [vmem:[#allocation2] sm:$0x1]
    %v25 = vld [vmem:[%s1] sm:$0x1]
    %v26 = vmul.f32 %v24, %v25
    %vm27 = vcmask 57344
    %v28 = vsel %vm27, %v26, 0.0
    %29 = vadd.xlane.f32.xlu0 %v28
    %v30 = vpop.xlane.xlu0 %29
    %v31 = vmax.f32 %v30, -1.0
    %vm32 = vcmask 0
    %33 = vst.msk [vmem:[#allocation5] sm:$0x1] %vm32, %v31
    // Predicated region
    $region14: #{tpu_custom_call.1} parent=1 // pred_check
      _
    $region15: #{tpu_custom_call.1} parent=1 // pred_check_branch
      %35 = sbr.rel (0) target = $region17
    $region16: #{tpu_custom_call.1} parent=1 // pred_region
      %s37 = ssub.s32 16, 16
      %38 = vsyncadd [#allocation4], %s37
      %s40 = sshll.u32 [#allocation5], 4
      %s41 = int_to_ptr.vmem [resolvable:$true] %s40
      %43 = dma.vmem_to_hbm [thread:$0]  %s41, 16, %s2, [#allocation4]
    $region17: #{tpu_custom_call.1} parent=1 // pred_fallthru
      _
    // Predicated region
    $region18: #{tpu_custom_call.1} parent=1 // pred_check
      _
    $region19: #{tpu_custom_call.1} parent=1 // pred_check_branch
      %45 = sbr.rel (0) target = $region21
    $region20: #{tpu_custom_call.1} parent=1 // pred_region
      %46 = dma.done [#allocation4], 16
    $region21: #{tpu_custom_call.1} parent=1 // pred_fallthru
      _
    %47 = vsyncpa [#allocation3], 1
    %48 = vsyncpa [#allocation4], 1

</llo_original>
